<compile_context>
chip_gen: v7x
topology: tpu7x:2x2x1
jax: 0.10.0
libtpu: 0.0.40
codegen_flags: <defaults>
</compile_context>

<pallas_src>
import functools

import jax
import jax.numpy as jnp
from jax.experimental import pallas as pl
from jax.experimental.pallas import tpu as pltpu


_CUT_OFF = 10.0
_SQRT_2PI = (2.0 * 3.14159) ** 0.5   # matches the torch.jit gaussian() constant


def _gaussian_kernel(x_ref, p_ref, o_ref):
    # x_ref: (tile_g, M)     distances, lane-dense on M
    # p_ref: (3, K)          rows: [mean, inv_c, log_coef]
    # o_ref: (tile_g, M, K)  output
    x = x_ref[...]                                  # (tile_g, M) f32
    p = p_ref[...]                                  # (3, K) f32
    mean = p[0:1, :]                                # (1, K)
    inv_c = p[1:2, :]                               # (1, K)  1/(std*sqrt(2))
    log_coef = p[2:3, :]                            # (1, K)  -log(sqrt(2pi)*std)

    # cutoff_fn on the narrow (tile_g, M) slab: D/10 -> poly -> where
    t = x * (1.0 / _CUT_OFF)
    t3 = t * t * t
    t4 = t3 * t
    t5 = t4 * t
    cut = jnp.where(t < 1.0,
                    1.0 - 6.0 * t5 + 15.0 * t4 - 10.0 * t3,
                    jnp.zeros_like(t))              # (tile_g, M)

    # Column-ize x (lanes -> sublanes); amortized 128x by the K broadcast.
    xc = x[..., None]                               # (tile_g, M, 1)
    cutc = cut[..., None]                           # (tile_g, M, 1)

    # gaussian: exp(-0.5*((x-m)/s)^2) / (sqrt(2*pi)*s)
    #         = exp(log_coef - ((x-m)*inv_c)^2)     (div + post-exp mul hoisted)
    z = (xc - mean) * inv_c                         # (tile_g, M, K)
    g = jnp.exp(log_coef - z * z)                   # (tile_g, M, K)

    # TODO(synk): optional further v7x VALU cut: fold cut into the exponent in
    #             log space (exp(log(cut) + log_coef - z*z), exp(-inf)=0).
    o_ref[...] = (cutc * g).astype(o_ref.dtype)


def _choose_tile_g(G, M, block_rows):
    """Rows of the (G, M) x-view per grid step; (G*tile rows, K) output block."""
    want = max(1, block_rows // max(M, 1))
    if want >= G:
        return G                       # single block on the leading dim
    if want >= 8:
        want = (want // 8) * 8         # second-minor dim of x block: mult of 8
    else:
        want = 8 if G > 8 else G
    return min(want, G)


@functools.partial(jax.jit,
                   static_argnames=("block_rows", "out_dtype", "out_buffers"))
def gaussian_layer_forward(x, means_weight, stds_weight, *,
                           block_rows=2048, out_dtype=jnp.float32,
                           out_buffers=None):
    """Pallas implementation of GaussianLayer.forward.

    x:            [B, N, M] float32 distances
    means_weight: [1, K]    nn.Embedding(1, K).weight
    stds_weight:  [1, K]    nn.Embedding(1, K).weight
    block_rows:   ~rows of (row, K) output per grid step (2048 ~= 1 MiB f32
                  block; 4096 is fine on 128 MiB-VMEM v5e/v6e).
    out_dtype:    float32 default.  bfloat16 recommended on v5e/v6e (kernel is
                  HBM-write bound there; ~1.7-2x) if downstream accepts it.
    out_buffers:  None (double-buffer) or 3 on v7x for deeper writeback.
    returns:      [B, N, M, K] in out_dtype.
    """
    B, N, M = x.shape
    K = means_weight.shape[-1]
    G = B * N
    R = G * M

    mean = means_weight.astype(jnp.float32).reshape(1, K)
    std = jnp.abs(stds_weight.astype(jnp.float32).reshape(1, K)) + 1e-5
    inv_c = 1.0 / (std * (2.0 ** 0.5))          # 1 / (std*sqrt(2))
    log_coef = -jnp.log(_SQRT_2PI * std)        # -log(sqrt(2*pi)*std)
    params = jnp.concatenate([mean, inv_c, log_coef], axis=0)   # (3, K)

    # Lane-dense x view; metadata-only when N % 8 == 0, otherwise a tiny
    # relayout of x only (x is 128x smaller than the output).
    xg = x.reshape(G, M).astype(jnp.float32)

    tile_g = _choose_tile_g(G, M, block_rows)
    grid = (pl.cdiv(G, tile_g),)

    out_itemsize = jnp.dtype(out_dtype).itemsize
    x_padded_bytes = 4 * G * (((M + 127) // 128) * 128)   # lane-padded x stream
    cost = pl.CostEstimate(
        flops=5 * R * K + 12 * R,              # z ops + cut mul + cutoff poly
        transcendentals=R * K,                 # one exp per output element
        bytes_accessed=x_padded_bytes + 3 * K * 4 + R * K * out_itemsize,
    )

    out_block = (tile_g, M, K)
    out_index = lambda i: (i, 0, 0)
    if out_buffers is None:
        out_spec = pl.BlockSpec(out_block, out_index)
    else:
        out_spec = pl.BlockSpec(out_block, out_index,
                                pipeline_mode=pl.Buffered(out_buffers))

    out = pl.pallas_call(
        _gaussian_kernel,
        out_shape=jax.ShapeDtypeStruct((G, M, K), out_dtype),
        grid_spec=pltpu.PrefetchScalarGridSpec(
            num_scalar_prefetch=0,
            grid=grid,
            in_specs=[
                pl.BlockSpec((tile_g, M), lambda i: (i, 0)),   # x rows
                pl.BlockSpec((3, K), lambda i: (0, 0)),        # params (resident)
            ],
            out_specs=out_spec,
        ),
        compiler_params=pltpu.CompilerParams(
            dimension_semantics=("parallel",)),
        cost_estimate=cost,
    )(xg, params)

    # (G, M, K) -> (B, N, M, K) keeps the last two dims: metadata-only always.
    return out.reshape(B, N, M, K)


def gaussian_layer_reference(x, means_weight, stds_weight):
    """Pure-JAX reference mirroring the PyTorch forward."""
    xe = x[..., None].astype(jnp.float32)                       # [B,N,M,1]
    mean = means_weight.astype(jnp.float32).reshape(-1)         # [K]
    std = jnp.abs(stds_weight.astype(jnp.float32).reshape(-1)) + 1e-5
    xc = xe / 10.0
    cut = jnp.where(xc < 1.0,
                    1.0 - 6.0 * xc**5 + 15.0 * xc**4 - 10.0 * xc**3,
                    jnp.zeros_like(xc))
    a = (2.0 * 3.14159) ** 0.5
    g = jnp.exp(-0.5 * ((xe - mean) / std) ** 2) / (a * std)
    return (cut * g).astype(jnp.float32)


if __name__ == "__main__":
    K = 128
    edge_types = 1024  # mul/bias embeddings exist in __init__ but are unused in forward
    B, N, M = 2, 8, 8

    key = jax.random.PRNGKey(0)
    k_x, k_mean, k_std = jax.random.split(key, 3)

    # Deterministic "parameter" init matching nn.init.uniform_(.., 0, 3).
    means_weight = jax.random.uniform(k_mean, (1, K), jnp.float32, 0.0, 3.0)
    stds_weight = jax.random.uniform(k_std, (1, K), jnp.float32, 0.0, 3.0)

    # Distances in [0, 12) so the cutoff_fn branch is exercised both ways.
    x = jax.random.uniform(k_x, (B, N, M), jnp.float32, 0.0, 12.0)
    edge_type_ids = jnp.zeros((B, N, M), jnp.int32)  # unused by forward, kept for parity

    ref = gaussian_layer_reference(x, means_weight, stds_weight)

    # f32 output (default, exact-parity path).
    out = gaussian_layer_forward(x, means_weight, stds_weight)
    out = jax.block_until_ready(out)
    assert out.shape == (B, N, M, K), out.shape
    assert jnp.allclose(out, ref, atol=1e-5, rtol=1e-5), \
        float(jnp.max(jnp.abs(out - ref)))

    # bf16 output path (recommended on mem-bound v5e/v6e); tolerance gated on
    # the bf16 store, compute stays f32.
    out_bf16 = gaussian_layer_forward(x, means_weight, stds_weight,
                                      out_dtype=jnp.bfloat16)
    out_bf16 = jax.block_until_ready(out_bf16)
    assert out_bf16.shape == (B, N, M, K), out_bf16.shape
    assert jnp.allclose(out_bf16.astype(jnp.float32), ref, atol=2e-2, rtol=2e-2), \
        float(jnp.max(jnp.abs(out_bf16.astype(jnp.float32) - ref)))

    print("KERNEL_OK")
</pallas_src>

<mosaic_0001>
module attributes {stable_mosaic.version = 11 : i64} {
  func.func @_gaussian_kernel(%arg0: i32, %arg1: memref<16x8xf32, #tpu.memory_space<vmem>>, %arg2: memref<3x128xf32, #tpu.memory_space<vmem>>, %arg3: memref<16x8x128xf32, #tpu.memory_space<vmem>>) attributes {dimension_semantics = [#tpu.dimension_semantics<parallel>], iteration_bounds = array<i64: 1>, scalar_prefetch = 0 : i64, scratch_operands = 0 : i64, tpu.core_type = #tpu.core_type<tc>, window_params = [{transform_indices = @transform_0, window_bounds = array<i64: 16, 8>}, {pipeline_mode = #tpu.pipeline_mode<synchronous>, transform_indices = @transform_1, window_bounds = array<i64: 3, 128>}, {transform_indices = @transform_2, window_bounds = array<i64: 16, 8, 128>}]} {
    %c0 = arith.constant 0 : index
    %c0_0 = arith.constant 0 : index
    %0 = vector.load %arg1[%c0, %c0_0] : memref<16x8xf32, #tpu.memory_space<vmem>>, vector<16x8xf32>
    %c0_1 = arith.constant 0 : index
    %c0_2 = arith.constant 0 : index
    %1 = vector.load %arg2[%c0_1, %c0_2] : memref<3x128xf32, #tpu.memory_space<vmem>>, vector<3x128xf32>
    %2 = vector.extract_strided_slice %1 {offsets = [0, 0], sizes = [1, 128], strides = [1, 1]} : vector<3x128xf32> to vector<1x128xf32>
    %3 = vector.extract_strided_slice %1 {offsets = [1, 0], sizes = [1, 128], strides = [1, 1]} : vector<3x128xf32> to vector<1x128xf32>
    %4 = vector.extract_strided_slice %1 {offsets = [2, 0], sizes = [1, 128], strides = [1, 1]} : vector<3x128xf32> to vector<1x128xf32>
    %cst = arith.constant 1.000000e-01 : f32
    %5 = vector.broadcast %cst : f32 to vector<16x8xf32>
    %6 = arith.mulf %0, %5 : vector<16x8xf32>
    %7 = arith.mulf %6, %6 : vector<16x8xf32>
    %8 = arith.mulf %7, %6 : vector<16x8xf32>
    %9 = arith.mulf %8, %6 : vector<16x8xf32>
    %10 = arith.mulf %9, %6 : vector<16x8xf32>
    %cst_3 = arith.constant 1.000000e+00 : f32
    %11 = vector.broadcast %cst_3 : f32 to vector<16x8xf32>
    %12 = arith.cmpf olt, %6, %11 : vector<16x8xf32>
    %cst_4 = arith.constant 6.000000e+00 : f32
    %13 = vector.broadcast %cst_4 : f32 to vector<16x8xf32>
    %14 = arith.mulf %13, %10 : vector<16x8xf32>
    %cst_5 = arith.constant 1.000000e+00 : f32
    %15 = vector.broadcast %cst_5 : f32 to vector<16x8xf32>
    %16 = arith.subf %15, %14 : vector<16x8xf32>
    %cst_6 = arith.constant 1.500000e+01 : f32
    %17 = vector.broadcast %cst_6 : f32 to vector<16x8xf32>
    %18 = arith.mulf %17, %9 : vector<16x8xf32>
    %19 = arith.addf %16, %18 : vector<16x8xf32>
    %cst_7 = arith.constant 1.000000e+01 : f32
    %20 = vector.broadcast %cst_7 : f32 to vector<16x8xf32>
    %21 = arith.mulf %20, %8 : vector<16x8xf32>
    %22 = arith.subf %19, %21 : vector<16x8xf32>
    %cst_8 = arith.constant 0.000000e+00 : f32
    %23 = vector.broadcast %cst_8 : f32 to vector<16x8xf32>
    %24 = arith.select %12, %22, %23 : vector<16x8xi1>, vector<16x8xf32>
    %25 = vector.shape_cast %0 : vector<16x8xf32> to vector<16x8x1xf32>
    %26 = vector.shape_cast %24 : vector<16x8xf32> to vector<16x8x1xf32>
    %27 = vector.shape_cast %2 : vector<1x128xf32> to vector<1x1x128xf32>
    %28 = vector.broadcast %25 : vector<16x8x1xf32> to vector<16x8x128xf32>
    %29 = vector.broadcast %27 : vector<1x1x128xf32> to vector<16x8x128xf32>
    %30 = arith.subf %28, %29 : vector<16x8x128xf32>
    %31 = vector.shape_cast %3 : vector<1x128xf32> to vector<1x1x128xf32>
    %32 = vector.broadcast %31 : vector<1x1x128xf32> to vector<16x8x128xf32>
    %33 = arith.mulf %30, %32 : vector<16x8x128xf32>
    %34 = arith.mulf %33, %33 : vector<16x8x128xf32>
    %35 = vector.shape_cast %4 : vector<1x128xf32> to vector<1x1x128xf32>
    %36 = vector.broadcast %35 : vector<1x1x128xf32> to vector<16x8x128xf32>
    %37 = arith.subf %36, %34 : vector<16x8x128xf32>
    %38 = math.exp %37 : vector<16x8x128xf32>
    %39 = vector.broadcast %26 : vector<16x8x1xf32> to vector<16x8x128xf32>
    %40 = arith.mulf %39, %38 : vector<16x8x128xf32>
    %c0_9 = arith.constant 0 : index
    %c0_10 = arith.constant 0 : index
    %c0_11 = arith.constant 0 : index
    %41 = vector.load %arg3[%c0_9, %c0_10, %c0_11] : memref<16x8x128xf32, #tpu.memory_space<vmem>>, vector<16x8x128xf32>
    tpu.vector_store %arg3[%c0_9, %c0_10, %c0_11], %40 {strides = array<i32>} : memref<16x8x128xf32, #tpu.memory_space<vmem>>, vector<16x8x128xf32>,
    return
  }
  func.func @transform_0(%arg0: i32) -> (i32, i32) {
    %c0_i32 = arith.constant 0 : i32
    %c0_i32_0 = arith.constant 0 : i32
    return %arg0, %c0_i32 : i32, i32
  }
  func.func @transform_1(%arg0: i32) -> (i32, i32) {
    %c0_i32 = arith.constant 0 : i32
    %c0_i32_0 = arith.constant 0 : i32
    %c0_i32_1 = arith.constant 0 : i32
    return %c0_i32, %c0_i32_0 : i32, i32
  }
  func.func @transform_2(%arg0: i32) -> (i32, i32, i32) {
    %c0_i32 = arith.constant 0 : i32
    %c0_i32_0 = arith.constant 0 : i32
    %c0_i32_1 = arith.constant 0 : i32
    return %arg0, %c0_i32, %c0_i32_0 : i32, i32, i32
  }
}

</mosaic_0001>

<llo_original>
// kernel: gaussian_layer_forward.1
$region0: #{gaussian_layer_forward.1}
  #allocation0 [shape = 'u32[]', space=smem, size = 0x4, offset = 0x4, fixed_abs, tag = 'smem constant byte address 0x4 - core index']
  #allocation1 [shape = 'u32[144,128]{1,0:T(1,128)}', space=vmem, size = 0x12000, scoped, tag = 'internal scratch']
  %s0 = inlined_call_operand.vmem [shape: f32[16,8], index: 0, kind: input, shape index: {}]
  %s1 = inlined_call_operand.vmem [shape: f32[3,128], index: 1, kind: input, shape index: {}]
  %s2 = inlined_call_operand.hbm [shape: f32[16,8,128], index: 2, kind: output, shape index: {}]
  %s3 = sld [smem:[#allocation0]]
  $region18: #{gaussian_layer_forward.1} parent=0
    _
  %s5 = ssub.s32 1, %s3
  %s6 = scalar_select 0, %s5, %s3
  $region1: #{gaussian_layer_forward.1} parent=0
    #allocation2 [shape = 'u8[65536]{0}', space=vmem, size = 0x10000, scoped, tag = 'output window, operand 0, single buffered']
    #allocation3 [shape = 's32[1]{0}', space=sflag, size = 0x4, scoped, tag = 'scoped memory for gaussian_layer_forward.1']
    %7 = vsyncpa [#allocation3], 0
    // Predicated region
    $region2: #{gaussian_layer_forward.1} parent=1 // pred_check
      _
    $region3: #{gaussian_layer_forward.1} parent=1 // pred_check_branch
      %9 = sbr.rel (0) target = $region5
    $region4: #{gaussian_layer_forward.1} parent=1 // pred_region
      _
    $region5: #{gaussian_layer_forward.1} parent=1 // pred_fallthru
      _
    // Predicated region
    $region6: #{gaussian_layer_forward.1} parent=1 // pred_check
      _
    $region7: #{gaussian_layer_forward.1} parent=1 // pred_check_branch
      %11 = sbr.rel (0) target = $region9
    $region8: #{gaussian_layer_forward.1} parent=1 // pred_region
      _
    $region9: #{gaussian_layer_forward.1} parent=1 // pred_fallthru
      _
    %v12 = vld [vmem:[%s0] sm:$0xff]
    %v13 = vld [vmem:[%s0 + $0x8] sm:$0xff]
    %v14 = vld [vmem:[%s1] sm:$0x7]
    %v15 = vmul.f32 %v12, 0.1
    %v16 = vmul.f32 %v13, 0.1
    %v17 = vmul.f32 %v15, %v15
    %v18 = vmul.f32 %v16, %v16
    %v19 = vmul.f32 %v17, %v15
    %v20 = vmul.f32 %v18, %v16
    %v21 = vmul.f32 %v19, %v15
    %v22 = vmul.f32 %v20, %v16
    %v23 = vmul.f32 %v21, %v15
    %v24 = vmul.f32 %v22, %v16
    %vm25 = vcmp.lt.f32.partialorder %v15, 1.0
    %vm26 = vcmp.lt.f32.partialorder %v16, 1.0
    %v27 = vmul.f32 %v23, 6.0
    %v28 = vmul.f32 %v24, 6.0
    %v29 = vsub.f32 1.0, %v27
    %v30 = vsub.f32 1.0, %v28
    %v31 = vmul.f32 %v21, 15.0
    %v32 = vmul.f32 %v22, 15.0
    %v33 = vadd.f32 %v29, %v31
    %v34 = vadd.f32 %v30, %v32
    %v35 = vmul.f32 %v19, 10.0
    %v36 = vmul.f32 %v20, 10.0
    %v37 = vsub.f32 %v33, %v35
    %v38 = vsub.f32 %v34, %v36
    %v39 = vsel %vm25, %v37, 0.0
    %v40 = vsel %vm26, %v38, 0.0
    %v41 = vlaneseq
    %v42 = vshrl.u32 %v41, 7
    %v43 = vsub.s32 0, %v42
    %v44 = vrot.slane %v12, %v43
    %46 = vbcast.lane.b32.xlu0 %v44, 256
    %v47 = vpop.permute.xlu0 %46
    %v48 = vlaneseq
    %v49 = vshrl.u32 %v48, 7
    %v50 = vsub.s32 1, %v49
    %v51 = vrot.slane %v12, %v50
    %53 = vbcast.lane.b32.xlu0 %v51, 256
    %v54 = vpop.permute.xlu0 %53
    %v55 = vlaneseq
    %v56 = vshrl.u32 %v55, 7
    %v57 = vsub.s32 2, %v56
    %v58 = vrot.slane %v12, %v57
    %60 = vbcast.lane.b32.xlu0 %v58, 256
    %v61 = vpop.permute.xlu0 %60
    %v62 = vlaneseq
    %v63 = vshrl.u32 %v62, 7
    %v64 = vsub.s32 3, %v63
    %v65 = vrot.slane %v12, %v64
    %67 = vbcast.lane.b32.xlu0 %v65, 256
    %v68 = vpop.permute.xlu0 %67
    %v69 = vlaneseq
    %v70 = vshrl.u32 %v69, 7
    %v71 = vsub.s32 4, %v70
    %v72 = vrot.slane %v12, %v71
    %74 = vbcast.lane.b32.xlu0 %v72, 256
    %v75 = vpop.permute.xlu0 %74
    %v76 = vlaneseq
    %v77 = vshrl.u32 %v76, 7
    %v78 = vsub.s32 5, %v77
    %v79 = vrot.slane %v12, %v78
    %81 = vbcast.lane.b32.xlu0 %v79, 256
    %v82 = vpop.permute.xlu0 %81
    %v83 = vlaneseq
    %v84 = vshrl.u32 %v83, 7
    %v85 = vsub.s32 6, %v84
    %v86 = vrot.slane %v12, %v85
    %88 = vbcast.lane.b32.xlu0 %v86, 256
    %v89 = vpop.permute.xlu0 %88
    %v90 = vlaneseq
    %v91 = vshrl.u32 %v90, 7
    %v92 = vsub.s32 7, %v91
    %v93 = vrot.slane %v12, %v92
    %95 = vbcast.lane.b32.xlu0 %v93, 256
    %v96 = vpop.permute.xlu0 %95
    %v97 = vlaneseq
    %v98 = vshrl.u32 %v97, 7
    %v99 = vsub.s32 0, %v98
    %v100 = vrot.slane %v13, %v99
    %102 = vbcast.lane.b32.xlu0 %v100, 256
    %v103 = vpop.permute.xlu0 %102
    %v104 = vlaneseq
    %v105 = vshrl.u32 %v104, 7
    %v106 = vsub.s32 1, %v105
    %v107 = vrot.slane %v13, %v106
    %109 = vbcast.lane.b32.xlu0 %v107, 256
    %v110 = vpop.permute.xlu0 %109
    %v111 = vlaneseq
    %v112 = vshrl.u32 %v111, 7
    %v113 = vsub.s32 2, %v112
    %v114 = vrot.slane %v13, %v113
    %116 = vbcast.lane.b32.xlu0 %v114, 256
    %v117 = vpop.permute.xlu0 %116
    %v118 = vlaneseq
    %v119 = vshrl.u32 %v118, 7
    %v120 = vsub.s32 3, %v119
    %v121 = vrot.slane %v13, %v120
    %123 = vbcast.lane.b32.xlu0 %v121, 256
    %v124 = vpop.permute.xlu0 %123
    %v125 = vlaneseq
    %v126 = vshrl.u32 %v125, 7
    %v127 = vsub.s32 4, %v126
    %v128 = vrot.slane %v13, %v127
    %130 = vbcast.lane.b32.xlu0 %v128, 256
    %v131 = vpop.permute.xlu0 %130
    %v132 = vlaneseq
    %v133 = vshrl.u32 %v132, 7
    %v134 = vsub.s32 5, %v133
    %v135 = vrot.slane %v13, %v134
    %137 = vbcast.lane.b32.xlu0 %v135, 256
    %v138 = vpop.permute.xlu0 %137
    %v139 = vlaneseq
    %v140 = vshrl.u32 %v139, 7
    %v141 = vsub.s32 6, %v140
    %v142 = vrot.slane %v13, %v141
    %144 = vbcast.lane.b32.xlu0 %v142, 256
    %v145 = vpop.permute.xlu0 %144
    %v146 = vlaneseq
    %v147 = vshrl.u32 %v146, 7
    %v148 = vsub.s32 7, %v147
    %v149 = vrot.slane %v13, %v148
    %151 = vbcast.lane.b32.xlu0 %v149, 256
    %v152 = vpop.permute.xlu0 %151
    %v153 = vlaneseq
    %v154 = vshrl.u32 %v153, 7
    %v155 = vsub.s32 0, %v154
    %v156 = vrot.slane %v39, %v155
    %158 = vbcast.lane.b32.xlu0 %v156, 256
    %v159 = vpop.permute.xlu0 %158
    %v160 = vlaneseq
    %v161 = vshrl.u32 %v160, 7
    %v162 = vsub.s32 1, %v161
    %v163 = vrot.slane %v39, %v162
    %165 = vbcast.lane.b32.xlu0 %v163, 256
    %v166 = vpop.permute.xlu0 %165
    %v167 = vlaneseq
    %v168 = vshrl.u32 %v167, 7
    %v169 = vsub.s32 2, %v168
    %v170 = vrot.slane %v39, %v169
    %172 = vbcast.lane.b32.xlu0 %v170, 256
    %v173 = vpop.permute.xlu0 %172
    %v174 = vlaneseq
    %v175 = vshrl.u32 %v174, 7
    %v176 = vsub.s32 3, %v175
    %v177 = vrot.slane %v39, %v176
    %179 = vbcast.lane.b32.xlu0 %v177, 256
    %v180 = vpop.permute.xlu0 %179
    %v181 = vlaneseq
    %v182 = vshrl.u32 %v181, 7
    %v183 = vsub.s32 4, %v182
    %v184 = vrot.slane %v39, %v183
    %186 = vbcast.lane.b32.xlu0 %v184, 256
    %v187 = vpop.permute.xlu0 %186
    %v188 = vlaneseq
    %v189 = vshrl.u32 %v188, 7
    %v190 = vsub.s32 5, %v189
    %v191 = vrot.slane %v39, %v190
    %193 = vbcast.lane.b32.xlu0 %v191, 256
    %v194 = vpop.permute.xlu0 %193
    %v195 = vlaneseq
    %v196 = vshrl.u32 %v195, 7
    %v197 = vsub.s32 6, %v196
    %v198 = vrot.slane %v39, %v197
    %200 = vbcast.lane.b32.xlu0 %v198, 256
    %v201 = vpop.permute.xlu0 %200
    %v202 = vlaneseq
    %v203 = vshrl.u32 %v202, 7
    %v204 = vsub.s32 7, %v203
    %v205 = vrot.slane %v39, %v204
    %207 = vbcast.lane.b32.xlu0 %v205, 256
    %v208 = vpop.permute.xlu0 %207
    %v209 = vlaneseq
    %v210 = vshrl.u32 %v209, 7
    %v211 = vsub.s32 0, %v210
    %v212 = vrot.slane %v40, %v211
    %214 = vbcast.lane.b32.xlu0 %v212, 256
    %v215 = vpop.permute.xlu0 %214
    %v216 = vlaneseq
    %v217 = vshrl.u32 %v216, 7
    %v218 = vsub.s32 1, %v217
    %v219 = vrot.slane %v40, %v218
    %221 = vbcast.lane.b32.xlu0 %v219, 256
    %v222 = vpop.permute.xlu0 %221
    %v223 = vlaneseq
    %v224 = vshrl.u32 %v223, 7
    %v225 = vsub.s32 2, %v224
    %v226 = vrot.slane %v40, %v225
    %228 = vbcast.lane.b32.xlu0 %v226, 256
    %v229 = vpop.permute.xlu0 %228
    %v230 = vlaneseq
    %v231 = vshrl.u32 %v230, 7
    %v232 = vsub.s32 3, %v231
    %v233 = vrot.slane %v40, %v232
    %235 = vbcast.lane.b32.xlu0 %v233, 256
    %v236 = vpop.permute.xlu0 %235
    %v237 = vlaneseq
    %v238 = vshrl.u32 %v237, 7
    %v239 = vsub.s32 4, %v238
    %v240 = vrot.slane %v40, %v239
    %242 = vbcast.lane.b32.xlu0 %v240, 256
    %v243 = vpop.permute.xlu0 %242
    %v244 = vlaneseq
    %v245 = vshrl.u32 %v244, 7
    %v246 = vsub.s32 5, %v245
    %v247 = vrot.slane %v40, %v246
    %249 = vbcast.lane.b32.xlu0 %v247, 256
    %v250 = vpop.permute.xlu0 %249
    %v251 = vlaneseq
    %v252 = vshrl.u32 %v251, 7
    %v253 = vsub.s32 6, %v252
    %v254 = vrot.slane %v40, %v253
    %256 = vbcast.lane.b32.xlu0 %v254, 256
    %v257 = vpop.permute.xlu0 %256
    %v258 = vlaneseq
    %v259 = vshrl.u32 %v258, 7
    %v260 = vsub.s32 7, %v259
    %v261 = vrot.slane %v40, %v260
    %263 = vbcast.lane.b32.xlu0 %v261, 256
    %v264 = vpop.permute.xlu0 %263
    %v265 = vlaneseq
    %v266 = vshrl.u32 %v265, 7
    %v267 = vsub.s32 0, %v266
    %v268 = vrot.slane %v14, %v267
    %v269 = vsub.f32 %v47, %v268
    %v270 = vsub.f32 %v54, %v268
    %v271 = vsub.f32 %v61, %v268
    %v272 = vsub.f32 %v68, %v268
    %v273 = vsub.f32 %v75, %v268
    %v274 = vsub.f32 %v82, %v268
    %v275 = vsub.f32 %v89, %v268
    %v276 = vsub.f32 %v96, %v268
    %v277 = vsub.f32 %v103, %v268
    %v278 = vsub.f32 %v110, %v268
    %v279 = vsub.f32 %v117, %v268
    %v280 = vsub.f32 %v124, %v268
    %v281 = vsub.f32 %v131, %v268
    %v282 = vsub.f32 %v138, %v268
    %v283 = vsub.f32 %v145, %v268
    %v284 = vsub.f32 %v152, %v268
    %v285 = vlaneseq
    %v286 = vshrl.u32 %v285, 7
    %v287 = vsub.s32 1, %v286
    %v288 = vrot.slane %v14, %v287
    %v289 = vmul.f32 %v269, %v288
    %v290 = vmul.f32 %v270, %v288
    %v291 = vmul.f32 %v271, %v288
    %v292 = vmul.f32 %v272, %v288
    %v293 = vmul.f32 %v273, %v288
    %v294 = vmul.f32 %v274, %v288
    %v295 = vmul.f32 %v275, %v288
    %v296 = vmul.f32 %v276, %v288
    %v297 = vmul.f32 %v277, %v288
    %v298 = vmul.f32 %v278, %v288
    %v299 = vmul.f32 %v279, %v288
    %v300 = vmul.f32 %v280, %v288
    %v301 = vmul.f32 %v281, %v288
    %v302 = vmul.f32 %v282, %v288
    %v303 = vmul.f32 %v283, %v288
    %v304 = vmul.f32 %v284, %v288
    %v305 = vmul.f32 %v289, %v289
    %v306 = vmul.f32 %v290, %v290
    %v307 = vmul.f32 %v291, %v291
    %v308 = vmul.f32 %v292, %v292
    %v309 = vmul.f32 %v293, %v293
    %v310 = vmul.f32 %v294, %v294
    %v311 = vmul.f32 %v295, %v295
    %v312 = vmul.f32 %v296, %v296
    %v313 = vmul.f32 %v297, %v297
    %v314 = vmul.f32 %v298, %v298
    %v315 = vmul.f32 %v299, %v299
    %v316 = vmul.f32 %v300, %v300
    %v317 = vmul.f32 %v301, %v301
    %v318 = vmul.f32 %v302, %v302
    %v319 = vmul.f32 %v303, %v303
    %v320 = vmul.f32 %v304, %v304
    %v321 = vlaneseq
    %v322 = vshrl.u32 %v321, 7
    %v323 = vsub.s32 2, %v322
    %v324 = vrot.slane %v14, %v323
    %v325 = vsub.f32 %v324, %v305
    %v326 = vsub.f32 %v324, %v306
    %v327 = vsub.f32 %v324, %v307
    %v328 = vsub.f32 %v324, %v308
    %v329 = vsub.f32 %v324, %v309
    %v330 = vsub.f32 %v324, %v310
    %v331 = vsub.f32 %v324, %v311
    %v332 = vsub.f32 %v324, %v312
    %v333 = vsub.f32 %v324, %v313
    %v334 = vsub.f32 %v324, %v314
    %v335 = vsub.f32 %v324, %v315
    %v336 = vsub.f32 %v324, %v316
    %v337 = vsub.f32 %v324, %v317
    %v338 = vsub.f32 %v324, %v318
    %v339 = vsub.f32 %v324, %v319
    %v340 = vsub.f32 %v324, %v320
    %v341 = vmul.f32 %v325, 1.442695
    %v342 = vpow.pop %v341
    %v343 = vmul.f32 %v326, 1.442695
    %v344 = vpow.pop %v343
    %v345 = vmul.f32 %v327, 1.442695
    %v346 = vpow.pop %v345
    %v347 = vmul.f32 %v328, 1.442695
    %v348 = vpow.pop %v347
    %v349 = vmul.f32 %v329, 1.442695
    %v350 = vpow.pop %v349
    %v351 = vmul.f32 %v330, 1.442695
    %v352 = vpow.pop %v351
    %v353 = vmul.f32 %v331, 1.442695
    %v354 = vpow.pop %v353
    %v355 = vmul.f32 %v332, 1.442695
    %v356 = vpow.pop %v355
    %v357 = vmul.f32 %v333, 1.442695
    %v358 = vpow.pop %v357
    %v359 = vmul.f32 %v334, 1.442695
    %v360 = vpow.pop %v359
    %v361 = vmul.f32 %v335, 1.442695
    %v362 = vpow.pop %v361
    %v363 = vmul.f32 %v336, 1.442695
    %v364 = vpow.pop %v363
    %v365 = vmul.f32 %v337, 1.442695
    %v366 = vpow.pop %v365
    %v367 = vmul.f32 %v338, 1.442695
    %v368 = vpow.pop %v367
    %v369 = vmul.f32 %v339, 1.442695
    %v370 = vpow.pop %v369
    %v371 = vmul.f32 %v340, 1.442695
    %v372 = vpow.pop %v371
    %v373 = vmul.f32 %v159, %v342
    %v374 = vmul.f32 %v166, %v344
    %v375 = vmul.f32 %v173, %v346
    %v376 = vmul.f32 %v180, %v348
    %v377 = vmul.f32 %v187, %v350
    %v378 = vmul.f32 %v194, %v352
    %v379 = vmul.f32 %v201, %v354
    %v380 = vmul.f32 %v208, %v356
    %v381 = vmul.f32 %v215, %v358
    %v382 = vmul.f32 %v222, %v360
    %v383 = vmul.f32 %v229, %v362
    %v384 = vmul.f32 %v236, %v364
    %v385 = vmul.f32 %v243, %v366
    %v386 = vmul.f32 %v250, %v368
    %v387 = vmul.f32 %v257, %v370
    %v388 = vmul.f32 %v264, %v372
    %389 = vst [vmem:[#allocation2] sm:$0xff] %v373
    %390 = vst [vmem:[#allocation2 + $0x8] sm:$0xff] %v374
    %391 = vst [vmem:[#allocation2 + $0x10] sm:$0xff] %v375
    %392 = vst [vmem:[#allocation2 + $0x18] sm:$0xff] %v376
    %393 = vst [vmem:[#allocation2 + $0x20] sm:$0xff] %v377
    %394 = vst [vmem:[#allocation2 + $0x28] sm:$0xff] %v378
    %395 = vst [vmem:[#allocation2 + $0x30] sm:$0xff] %v379
    %396 = vst [vmem:[#allocation2 + $0x38] sm:$0xff] %v380
    %397 = vst [vmem:[#allocation2 + $0x40] sm:$0xff] %v381
    %398 = vst [vmem:[#allocation2 + $0x48] sm:$0xff] %v382
    %399 = vst [vmem:[#allocation2 + $0x50] sm:$0xff] %v383
    %400 = vst [vmem:[#allocation2 + $0x58] sm:$0xff] %v384
    %401 = vst [vmem:[#allocation2 + $0x60] sm:$0xff] %v385
    %402 = vst [vmem:[#allocation2 + $0x68] sm:$0xff] %v386
    %403 = vst [vmem:[#allocation2 + $0x70] sm:$0xff] %v387
    %404 = vst [vmem:[#allocation2 + $0x78] sm:$0xff] %v388
    // Predicated region
    $region10: #{gaussian_layer_forward.1} parent=1 // pred_check
      _
    $region11: #{gaussian_layer_forward.1} parent=1 // pred_check_branch
      %406 = sbr.rel (0) target = $region13
    $region12: #{gaussian_layer_forward.1} parent=1 // pred_region
      %s408 = ssub.s32 2048, 2048
      %409 = vsyncadd [#allocation3], %s408
      %s410 = sshll.u32 [#allocation2], 4
      %s411 = int_to_ptr.vmem [resolvable:$true] %s410
      %416 = dma.vmem_to_hbm [thread:$0]  %s411, 2048, %s2, [#allocation3], 128, 128, 8
    $region13: #{gaussian_layer_forward.1} parent=1 // pred_fallthru
      _
    // Predicated region
    $region14: #{gaussian_layer_forward.1} parent=1 // pred_check
      _
    $region15: #{gaussian_layer_forward.1} parent=1 // pred_check_branch
      %418 = sbr.rel (0) target = $region17
    $region16: #{gaussian_layer_forward.1} parent=1 // pred_region
      %419 = dma.done [#allocation3], 2048
    $region17: #{gaussian_layer_forward.1} parent=1 // pred_fallthru
      _
    %420 = vsyncpa [#allocation3], 1

</llo_original>
